<compile_context>
chip_gen: v7x
topology: tpu7x:2x2x1
jax: 0.10.0
libtpu: 0.0.40
codegen_flags: <defaults>
</compile_context>

<pallas_src>
import jax
import jax.numpy as jnp
from jax.experimental import pallas as pl
from jax.experimental.pallas import tpu as pltpu

_SUBLANE = 8              # f32 sublane count
_MAX_TILE_B = 2048        # cap on rows per grid step (keeps VMEM tiny everywhere)
_SPLIT_THRESHOLD = 1024   # below this, use a single tile (step overhead dominates)


def _round_up(n, m):
    return ((n + m - 1) // m) * m


def _choose_batch_tiling(batch):
    """Pick (tile_rows, num_steps).

    Small batches -> a single sublane-aligned tile.  Larger batches -> an even
    number of near-equal tiles (balanced across v7x's 2 TensorCores) with
    minimal batch padding.
    """
    if batch <= _SPLIT_THRESHOLD:
        return max(_SUBLANE, _round_up(batch, _SUBLANE)), 1
    steps = -(-batch // _MAX_TILE_B)          # ceil-div
    if steps % 2:
        steps += 1                            # even step count for megacore balance
    tb = _round_up(-(-batch // steps), _SUBLANE)
    return tb, steps


def _affine_relu_kernel(x_ref, w_ref, b_ref, o_ref):
    """relu(x @ W + b) for one batch tile.

    x_ref: [tb, n_obs]  f32
    w_ref: [n_obs, n_out] f32 (VMEM-resident across all grid steps)
    b_ref: [1, n_out]     f32 (VMEM-resident)
    o_ref: [tb, n_out]    f32
    """
    y = jnp.dot(x_ref[...], w_ref[...], preferred_element_type=jnp.float32)
    o_ref[...] = jnp.maximum(y + b_ref[...], 0.0).astype(o_ref.dtype)


def collapse_params(params):
    """Fold the three activation-free linears into one affine map.

    Done once in f32, outside the forward hot path.  Exact up to f32
    accumulation order (the module has no inter-layer nonlinearity).
    """
    w1, b1 = params["w1"], params["b1"]
    w2, b2 = params["w2"], params["b2"]
    w3, b3 = params["w3"], params["b3"]
    w = (w1 @ w2) @ w3                       # [n_obs, n_out]
    b = (b1 @ w2 + b2) @ w3 + b3             # [1, n_out]
    return {"w": w.astype(jnp.float32), "b": b.astype(jnp.float32)}


def neural_network_forward(x, fused_params):
    """Fused forward pass: relu(x @ W + b) via a single Pallas kernel.

    x:            [batch, n_obs] f32
    fused_params: {"w": [n_obs, n_out] f32, "b": [1, n_out] f32}
    Returns [batch, n_out] f32.
    """
    w = fused_params["w"]
    b = fused_params["b"]
    batch, n_obs = x.shape
    n_out = w.shape[1]

    tb, steps = _choose_batch_tiling(batch)
    b_pad = tb * steps
    x_p = x if b_pad == batch else jnp.pad(x, ((0, b_pad - batch), (0, 0)))

    out = pl.pallas_call(
        _affine_relu_kernel,
        out_shape=jax.ShapeDtypeStruct((b_pad, n_out), jnp.float32),
        grid_spec=pltpu.PrefetchScalarGridSpec(
            num_scalar_prefetch=0,
            grid=(steps,),
            in_specs=[
                # x: tiled along the batch axis, auto double-buffered.
                pl.BlockSpec((tb, n_obs), lambda i: (i, 0)),
                # W, b: full-array blocks, constant index_map -> stay resident
                # in VMEM across every grid step.
                pl.BlockSpec((n_obs, n_out), lambda i: (0, 0)),
                pl.BlockSpec((1, n_out), lambda i: (0, 0)),
            ],
            # True-width output block (last dim == full array dim): no lane
            # padding, no post-kernel feature slice.
            out_specs=pl.BlockSpec((tb, n_out), lambda i: (i, 0)),
        ),
        compiler_params=pltpu.CompilerParams(
            dimension_semantics=("parallel",)),   # split batch tiles on v7x's 2 TCs
    )(x_p, w, b)

    return out if b_pad == batch else out[:batch]


def init_params(key, n_obs_individual, n_output, n_hidden):
    """Deterministic init mimicking nn.Linear defaults:
    U(-1/sqrt(fan_in), 1/sqrt(fan_in)).  Weights stored transposed ([in, out])
    so forward is x @ W + b."""
    keys = jax.random.split(key, 6)

    def linear(kw, kb, fan_in, fan_out):
        bound = 1.0 / jnp.sqrt(jnp.float32(fan_in))
        w = jax.random.uniform(kw, (fan_in, fan_out), jnp.float32, -bound, bound)
        b = jax.random.uniform(kb, (1, fan_out), jnp.float32, -bound, bound)
        return w, b

    w1, b1 = linear(keys[0], keys[1], n_obs_individual, n_hidden)
    w2, b2 = linear(keys[2], keys[3], n_hidden, n_hidden)
    w3, b3 = linear(keys[4], keys[5], n_hidden, n_output)
    return {"w1": w1, "b1": b1, "w2": w2, "b2": b2, "w3": w3, "b3": b3}


def _reference(x, p):
    """Sequential 3-layer f32 reference, matching the PyTorch forward order."""
    h = x @ p["w1"] + p["b1"]
    h = h @ p["w2"] + p["b2"]
    h = h @ p["w3"] + p["b3"]
    return jnp.maximum(h, 0.0)


if __name__ == "__main__":
    n_obs_individual = 16
    n_hidden = 32
    n_output = 8
    batch = 8

    key = jax.random.PRNGKey(0)
    kx, kp, kx2 = jax.random.split(key, 3)
    params = init_params(kp, n_obs_individual, n_output, n_hidden)
    fused = collapse_params(params)          # done once, outside the hot path

    # Small-batch case (matches the module's typical per-agent call).
    x = jax.random.normal(kx, (batch, n_obs_individual), jnp.float32)
    out = jax.block_until_ready(neural_network_forward(x, fused))
    ref = _reference(x, params)
    assert out.shape == (batch, n_output)
    # f32 end-to-end; tolerance covers TPU default-precision matmul + the
    # (mathematically exact) layer-fold reordering.
    assert jnp.allclose(out, ref, atol=5e-3, rtol=5e-3)

    # Larger batch: exercises the 2-step, megacore-parallel gridded path with
    # zero batch padding (tb = 520).
    big_batch = 1040
    xb = jax.random.normal(kx2, (big_batch, n_obs_individual), jnp.float32)
    out_b = jax.block_until_ready(neural_network_forward(xb, fused))
    ref_b = _reference(xb, params)
    assert out_b.shape == (big_batch, n_output)
    assert jnp.allclose(out_b, ref_b, atol=5e-3, rtol=5e-3)

    print("KERNEL_OK")
</pallas_src>

<mosaic_0001>
module attributes {stable_mosaic.version = 11 : i64} {
  func.func @_affine_relu_kernel(%arg0: i32, %arg1: memref<8x16xf32, #tpu.memory_space<vmem>>, %arg2: memref<16x8xf32, #tpu.memory_space<vmem>>, %arg3: memref<1x8xf32, #tpu.memory_space<vmem>>, %arg4: memref<8x8xf32, #tpu.memory_space<vmem>>) attributes {dimension_semantics = [#tpu.dimension_semantics<parallel>], iteration_bounds = array<i64: 1>, scalar_prefetch = 0 : i64, scratch_operands = 0 : i64, tpu.core_type = #tpu.core_type<tc>, window_params = [{transform_indices = @transform_0, window_bounds = array<i64: 8, 16>}, {pipeline_mode = #tpu.pipeline_mode<synchronous>, transform_indices = @transform_1, window_bounds = array<i64: 16, 8>}, {pipeline_mode = #tpu.pipeline_mode<synchronous>, transform_indices = @transform_2, window_bounds = array<i64: 1, 8>}, {transform_indices = @transform_3, window_bounds = array<i64: 8, 8>}]} {
    %c0 = arith.constant 0 : index
    %c0_0 = arith.constant 0 : index
    %0 = vector.load %arg1[%c0, %c0_0] : memref<8x16xf32, #tpu.memory_space<vmem>>, vector<8x16xf32>
    %c0_1 = arith.constant 0 : index
    %c0_2 = arith.constant 0 : index
    %1 = vector.load %arg2[%c0_1, %c0_2] : memref<16x8xf32, #tpu.memory_space<vmem>>, vector<16x8xf32>
    %cst = arith.constant dense<0.000000e+00> : vector<8x8xf32>
    %2 = tpu.matmul %0, %1, %cst {dimension_numbers = #tpu.dot_dimension_numbers<[1], [0], [0], [1], [0, 0, 1, 1], [], []>} : vector<8x16xf32>, vector<16x8xf32>, vector<8x8xf32> -> vector<8x8xf32>
    %c0_3 = arith.constant 0 : index
    %c0_4 = arith.constant 0 : index
    %3 = vector.load %arg3[%c0_3, %c0_4] : memref<1x8xf32, #tpu.memory_space<vmem>>, vector<1x8xf32>
    %4 = vector.broadcast %3 : vector<1x8xf32> to vector<8x8xf32>
    %5 = arith.addf %2, %4 : vector<8x8xf32>
    %cst_5 = arith.constant 0.000000e+00 : f32
    %6 = vector.broadcast %cst_5 : f32 to vector<8x8xf32>
    %7 = arith.maximumf %5, %6 : vector<8x8xf32>
    %c0_6 = arith.constant 0 : index
    %c0_7 = arith.constant 0 : index
    %8 = vector.load %arg4[%c0_6, %c0_7] : memref<8x8xf32, #tpu.memory_space<vmem>>, vector<8x8xf32>
    tpu.vector_store %arg4[%c0_6, %c0_7], %7 {strides = array<i32>} : memref<8x8xf32, #tpu.memory_space<vmem>>, vector<8x8xf32>,
    return
  }
  func.func @transform_0(%arg0: i32) -> (i32, i32) {
    %c0_i32 = arith.constant 0 : i32
    %c0_i32_0 = arith.constant 0 : i32
    return %arg0, %c0_i32 : i32, i32
  }
  func.func @transform_1(%arg0: i32) -> (i32, i32) {
    %c0_i32 = arith.constant 0 : i32
    %c0_i32_0 = arith.constant 0 : i32
    %c0_i32_1 = arith.constant 0 : i32
    return %c0_i32, %c0_i32_0 : i32, i32
  }
  func.func @transform_2(%arg0: i32) -> (i32, i32) {
    %c0_i32 = arith.constant 0 : i32
    %c0_i32_0 = arith.constant 0 : i32
    %c0_i32_1 = arith.constant 0 : i32
    return %c0_i32, %c0_i32_0 : i32, i32
  }
  func.func @transform_3(%arg0: i32) -> (i32, i32) {
    %c0_i32 = arith.constant 0 : i32
    %c0_i32_0 = arith.constant 0 : i32
    return %arg0, %c0_i32 : i32, i32
  }
}

</mosaic_0001>

<llo_original>
// kernel: tpu_custom_call.1
$region0: #{tpu_custom_call.1}
  #allocation0 [shape = 'u32[]', space=smem, size = 0x4, offset = 0x4, fixed_abs, tag = 'smem constant byte address 0x4 - core index']
  #allocation1 [shape = 'u32[144,128]{1,0:T(1,128)}', space=vmem, size = 0x12000, scoped, tag = 'internal scratch']
  %s0 = inlined_call_operand.vmem [shape: f32[8,16], index: 0, kind: input, shape index: {}]
  %s1 = inlined_call_operand.vmem [shape: f32[16,8], index: 1, kind: input, shape index: {}]
  %s2 = inlined_call_operand.vmem [shape: f32[1,8], index: 2, kind: input, shape index: {}]
  %s3 = inlined_call_operand.hbm [shape: f32[8,8], index: 3, kind: output, shape index: {}]
  %s4 = sld [smem:[#allocation0]]
  $region22: #{tpu_custom_call.1} parent=0
    _
  %s6 = ssub.s32 1, %s4
  %s7 = scalar_select 0, %s6, %s4
  $region1: #{tpu_custom_call.1} parent=0
    #allocation2 [shape = 'u8[4096]{0}', space=vmem, size = 0x1000, scoped, tag = 'output window, operand 0, single buffered']
    #allocation3 [shape = 's32[1]{0}', space=sflag, size = 0x4, scoped, tag = 'scoped memory for tpu_custom_call.1']
    %8 = vsyncpa [#allocation3], 0
    // Predicated region
    $region2: #{tpu_custom_call.1} parent=1 // pred_check
      _
    $region3: #{tpu_custom_call.1} parent=1 // pred_check_branch
      %10 = sbr.rel (0) target = $region5
    $region4: #{tpu_custom_call.1} parent=1 // pred_region
      _
    $region5: #{tpu_custom_call.1} parent=1 // pred_fallthru
      _
    // Predicated region
    $region6: #{tpu_custom_call.1} parent=1 // pred_check
      _
    $region7: #{tpu_custom_call.1} parent=1 // pred_check_branch
      %12 = sbr.rel (0) target = $region9
    $region8: #{tpu_custom_call.1} parent=1 // pred_region
      _
    $region9: #{tpu_custom_call.1} parent=1 // pred_fallthru
      _
    // Predicated region
    $region10: #{tpu_custom_call.1} parent=1 // pred_check
      _
    $region11: #{tpu_custom_call.1} parent=1 // pred_check_branch
      %14 = sbr.rel (0) target = $region13
    $region12: #{tpu_custom_call.1} parent=1 // pred_region
      _
    $region13: #{tpu_custom_call.1} parent=1 // pred_fallthru
      _
    %v15 = vld [vmem:[%s0] sm:$0xff]
    %v16 = vld [vmem:[%s1] sm:$0xff]
    %v17 = vld [vmem:[%s1 + $0x8] sm:$0xff]
    %v18 = vld [vmem:[%s2] sm:$0x1]
    %v20 = vlaneseq
    %v21 = vshrl.u32 %v20, 7
    %v22 = vsub.s32 0, %v21
    %v23 = vrot.slane %v18, %v22
    %vm25 = vcmask 130048
    %v27 = vsel %vm25, %v15, 0
    %29 = vmatprep.subr.mxu0 0.0
    %30 = vmatpush1.msra.mxu0 %v16
    %31 = vmatprep.subr.mxu0 0.0
    %32 = vmatpush1.msra.mxu0 %v17
    %33 = vmatprep.subr.mxu0 0.0
    %34 = vmatpush1.msra.mxu0 0.0
    %35 = vmatprep.subr.mxu0 0.0
    %36 = vmatpush1.msra.mxu0 0.0
    %37 = vmatprep.subr.mxu0 0.0
    %38 = vmatpush1.msra.mxu0 0.0
    %39 = vmatprep.subr.mxu0 0.0
    %40 = vmatpush1.msra.mxu0 0.0
    %41 = vmatprep.subr.mxu0 0.0
    %42 = vmatpush1.msra.mxu0 0.0
    %43 = vmatprep.subr.mxu0 0.0
    %44 = vmatpush1.msra.mxu0 0.0
    %45 = vmatprep.subr.mxu0 0.0
    %46 = vmatpush1.msra.mxu0 0.0
    %47 = vmatprep.subr.mxu0 0.0
    %48 = vmatpush1.msra.mxu0 0.0
    %49 = vmatprep.subr.mxu0 0.0
    %50 = vmatpush1.msra.mxu0 0.0
    %51 = vmatprep.subr.mxu0 0.0
    %52 = vmatpush1.msra.mxu0 0.0
    %53 = vmatprep.subr.mxu0 0.0
    %54 = vmatpush1.msra.mxu0 0.0
    %55 = vmatprep.subr.mxu0 0.0
    %56 = vmatpush1.msra.mxu0 0.0
    %57 = vmatprep.subr.mxu0 0.0
    %58 = vmatpush1.msra.mxu0 0.0
    %59 = vmatprep.subr.mxu0 0.0
    %60 = vmatpush1.msra.mxu0 0.0
    %61 = vmatprep.subr.mxu0 0.0
    %62 = vmatpush1.msra.mxu0 0.0
    %63 = vmatprep.subr.mxu0 0.0
    %64 = vmatpush1.msra.mxu0 0.0
    %65 = vmatprep.subr.mxu0 0.0
    %66 = vmatpush1.msra.mxu0 0.0
    %67 = vmatprep.subr.mxu0 0.0
    %68 = vmatpush1.msra.mxu0 0.0
    %69 = vmatprep.subr.mxu0 0.0
    %70 = vmatpush1.msra.mxu0 0.0
    %71 = vmatprep.subr.mxu0 0.0
    %72 = vmatpush1.msra.mxu0 0.0
    %73 = vmatprep.subr.mxu0 0.0
    %74 = vmatpush1.msra.mxu0 0.0
    %75 = vmatprep.subr.mxu0 0.0
    %76 = vmatpush1.msra.mxu0 0.0
    %77 = vmatprep.subr.mxu0 0.0
    %78 = vmatpush1.msra.mxu0 0.0
    %79 = vmatprep.subr.mxu0 0.0
    %80 = vmatpush1.msra.mxu0 0.0
    %81 = vmatprep.subr.mxu0 0.0
    %82 = vmatpush1.msra.mxu0 0.0
    %83 = vmatprep.subr.mxu0 0.0
    %84 = vmatpush1.msra.mxu0 0.0
    %85 = vmatprep.subr.mxu0 0.0
    %86 = vmatpush1.msra.mxu0 0.0
    %87 = vmatprep.subr.mxu0 0.0
    %88 = vmatpush1.msra.mxu0 0.0
    %89 = vmatprep.subr.mxu0 0.0
    %90 = vmatpush1.msra.mxu0 0.0
    %91 = vmatprep.subr.mxu0 0.0
    %92 = vmatpush1.msra.mxu0 0.0
    %93 = vmatprep.mubr.f32.mxu0 0.0
    %94 = vmatmul.mubr.f32.gmra.mrb[0].mxu0 %v27
    %v95 = vpop.f32.mrb[0].mxu0
    %v96 = vadd.f32 %v23, %v95
    %v97 = vpop.f32.mrb[0].mxu0
    %98 = vdwg.mxu0
    %v99 = vmax.f32 %v96, 0.0
    %vm100 = vcmask 64512
    %101 = vst.msk [vmem:[#allocation2] sm:$0xff] %vm100, %v99
    // Predicated region
    $region14: #{tpu_custom_call.1} parent=1 // pred_check
      _
    $region15: #{tpu_custom_call.1} parent=1 // pred_check_branch
      %103 = sbr.rel (0) target = $region17
    $region16: #{tpu_custom_call.1} parent=1 // pred_region
      %s105 = ssub.s32 128, 128
      %106 = vsyncadd [#allocation3], %s105
      %s108 = sshll.u32 [#allocation2], 4
      %s109 = int_to_ptr.vmem [resolvable:$true] %s108
      %111 = dma.vmem_to_hbm [thread:$0]  %s109, 128, %s3, [#allocation3]
    $region17: #{tpu_custom_call.1} parent=1 // pred_fallthru
      _
    // Predicated region
    $region18: #{tpu_custom_call.1} parent=1 // pred_check
      _
    $region19: #{tpu_custom_call.1} parent=1 // pred_check_branch
      %113 = sbr.rel (0) target = $region21
    $region20: #{tpu_custom_call.1} parent=1 // pred_region
      %114 = dma.done [#allocation3], 128
    $region21: #{tpu_custom_call.1} parent=1 // pred_fallthru
      _
    %115 = vsyncpa [#allocation3], 1

</llo_original>
